<compile_context>
chip_gen: v6e
topology: v6e:2x2x1
jax: 0.10.0
libtpu: 0.0.40
codegen_flags: <defaults>
</compile_context>

<pallas_src>
import functools

import jax
import jax.numpy as jnp
from jax.experimental import pallas as pl
from jax.experimental.pallas import tpu as pltpu

# TODO(synk): the real `hetero_conv` (message passing over edge_index_dict) is an
# external callable passed into forward(); it is modeled here as a per-node-type
# dense projection so the hot path (grouped matmul + leaky_relu) lives in Pallas.

NEG_SLOPE = 0.01          # F.leaky_relu default
LANE = 128                # TPU lane width: last-dim padding target
DEFAULT_TM = 256          # row tile: >=128 for MXU rows, multiple of 16 (bf16 sublanes)


def _round_up(x: int, m: int) -> int:
    return (x + m - 1) // m * m


def _grouped_linear_lrelu_kernel(gid_ref, x_ref, w_ref, o_ref):
    """One row tile of one node type: out = leaky_relu(X_tile @ W[group])."""
    del gid_ref  # consumed by the index_maps only
    h = jnp.dot(x_ref[...], w_ref[...], preferred_element_type=jnp.float32)
    # leaky_relu in f32 on the VPU; single full-lane-width store of the f32 result.
    o_ref[...] = jnp.where(h > 0, h, NEG_SLOPE * h).astype(o_ref.dtype)


@functools.partial(
    jax.jit, static_argnames=("node_types", "tm", "in_dim", "hidden_dim")
)
def _lp_heter_forward(x_dict, w_stacked, node_types, *, tm, in_dim, hidden_dim):
    """Grouped (all node types in one pallas_call) fused projection + leaky_relu."""
    compute_dtype = w_stacked.dtype
    num_types, k_pad, n_pad = w_stacked.shape

    # --- pack all node types into one lane/sublane-aligned LHS -----------------
    x_blocks = []
    group_ids = []
    row_counts = []
    for t, nt in enumerate(node_types):
        x = x_dict[nt]
        m = x.shape[0]
        row_counts.append(m)
        m_pad = _round_up(max(m, 1), tm)            # no M % tm assert: pad + slice
        xb = jnp.zeros((m_pad, k_pad), dtype=compute_dtype)
        xb = xb.at[:m, :in_dim].set(x.astype(compute_dtype))
        x_blocks.append(xb)
        group_ids.extend([t] * (m_pad // tm))

    x_stacked = jnp.concatenate(x_blocks, axis=0)
    gid = jnp.asarray(group_ids, dtype=jnp.int32)
    m_total = x_stacked.shape[0]
    num_tiles = m_total // tm

    cost = pl.CostEstimate(
        flops=2 * m_total * k_pad * n_pad,
        transcendentals=0,
        bytes_accessed=(x_stacked.size * x_stacked.dtype.itemsize
                        + w_stacked.size * w_stacked.dtype.itemsize
                        + m_total * n_pad * 4),
    )

    out = pl.pallas_call(
        _grouped_linear_lrelu_kernel,
        out_shape=jax.ShapeDtypeStruct((m_total, n_pad), jnp.float32),
        grid_spec=pltpu.PrefetchScalarGridSpec(
            num_scalar_prefetch=1,
            grid=(num_tiles,),
            in_specs=[
                # row tile of the packed LHS
                pl.BlockSpec((tm, k_pad), lambda i, g: (i, 0)),
                # weight of the node type owning this tile (leading dim squeezed)
                pl.BlockSpec((None, k_pad, n_pad), lambda i, g: (g[i], 0, 0)),
            ],
            out_specs=pl.BlockSpec((tm, n_pad), lambda i, g: (i, 0)),
        ),
        compiler_params=pltpu.CompilerParams(
            dimension_semantics=("parallel",),       # megacore-shard row tiles (v7x)
            vmem_limit_bytes=48 * 1024 * 1024,       # well inside v7x's 64 MiB/TC
        ),
        cost_estimate=cost,
    )(gid, x_stacked, w_stacked)
    # TODO(synk): if in_dim / hidden_dim grow to the multi-thousands, add K (and N)
    # grid axes with a VMEM f32 accumulator + pl.when init/finalize to cap VMEM on v7x.

    # --- unpack per node type ---------------------------------------------------
    results = {}
    offset = 0
    for t, nt in enumerate(node_types):
        m = row_counts[t]
        m_pad = _round_up(max(m, 1), tm)
        results[nt] = out[offset:offset + m, :hidden_dim]
        offset += m_pad
    return results


class LpHeterPallas:
    """JAX/Pallas re-implementation of Lp_heter's forward pass."""

    def __init__(self, edge_types, node_types, in_dim, hidden_dim, key, *,
                 tm=DEFAULT_TM, compute_dtype=jnp.bfloat16):
        self.edge_types = list(edge_types)
        self.node_types = tuple(node_types)
        self.rel2idx = {et: i for i, et in enumerate(self.edge_types)}
        self.in_dim = int(in_dim)
        self.hidden_dim = int(hidden_dim)
        self.tm = int(tm)
        self.compute_dtype = compute_dtype
        self.k_pad = _round_up(self.in_dim, LANE)
        self.n_pad = _round_up(self.hidden_dim, LANE)

        k_rel, k_conv = jax.random.split(key)
        # nn.Parameter(torch.Tensor(len(edge_types), hidden_dim)) — deterministic init;
        # unused by forward(), exactly like the PyTorch module.
        self.w_rels = jax.random.normal(
            k_rel, (len(self.edge_types), hidden_dim), dtype=jnp.float32) * 0.02

        # Synthetic hetero_conv weights: one projection per node type (f32 master copy).
        conv_keys = jax.random.split(k_conv, len(self.node_types))
        self.conv_w = {
            nt: jax.random.normal(ck, (self.in_dim, self.hidden_dim), jnp.float32)
            * (1.0 / jnp.sqrt(self.in_dim))
            for nt, ck in zip(self.node_types, conv_keys)
        }

        # Stacked, zero-padded, bf16 copy consumed by the grouped kernel.
        w_stacked = jnp.zeros((len(self.node_types), self.k_pad, self.n_pad),
                              jnp.float32)
        for t, nt in enumerate(self.node_types):
            w_stacked = w_stacked.at[t, :self.in_dim, :self.hidden_dim].set(
                self.conv_w[nt])
        self.w_stacked = w_stacked.astype(compute_dtype)

    def hetero_conv(self, x_dict):
        # Mirrors `hetero_conv(...)` returning, per node type, a tuple whose
        # element [0] is the node-feature matrix (leaky_relu already fused in-kernel).
        feats = _lp_heter_forward(
            x_dict, self.w_stacked, self.node_types,
            tm=self.tm, in_dim=self.in_dim, hidden_dim=self.hidden_dim)
        return {nt: (feats[nt],) for nt in self.node_types}

    def forward(self, x_dict):
        # matches `{key: F.leaky_relu(h[0]) for key, h in h_1.items()}`
        h_1 = self.hetero_conv(x_dict)
        h1 = {key: h[0] for key, h in h_1.items()}
        return h1


def _reference(x_dict, model):
    # Same math path: bf16-cast inputs, f32 accumulation, f32 leaky_relu.
    out = {}
    for nt in model.node_types:
        x = x_dict[nt].astype(model.compute_dtype)
        w = model.conv_w[nt].astype(model.compute_dtype)
        h = jnp.dot(x, w, preferred_element_type=jnp.float32)
        out[nt] = jnp.where(h > 0, h, NEG_SLOPE * h)
    return out


if __name__ == "__main__":
    key = jax.random.PRNGKey(0)
    k_model, k_a, k_b = jax.random.split(key, 3)

    node_types = ("gene", "disease")
    edge_types = [("gene", "interacts", "gene"),
                  ("gene", "associates", "disease"),
                  ("disease", "rev_associates", "gene")]

    in_dim = 32
    hidden_dim = 32
    num_nodes = {"gene": 16, "disease": 8}

    model = LpHeterPallas(edge_types, node_types, in_dim, hidden_dim, k_model)

    x_dict = {
        "gene": jax.random.normal(k_a, (num_nodes["gene"], in_dim), dtype=jnp.float32),
        "disease": jax.random.normal(k_b, (num_nodes["disease"], in_dim),
                                     dtype=jnp.float32),
    }

    out = model.forward(x_dict)
    out = jax.tree_util.tree_map(jax.block_until_ready, out)

    ref = _reference(x_dict, model)
    for nt in node_types:
        assert out[nt].shape == (num_nodes[nt], hidden_dim)
        assert out[nt].dtype == jnp.float32
        assert jnp.allclose(out[nt], ref[nt], atol=1e-5, rtol=1e-5), nt

    print("KERNEL_OK")
</pallas_src>

<mosaic_0001>
module attributes {stable_mosaic.version = 11 : i64} {
  func.func @_grouped_linear_lrelu_kernel(%arg0: i32, %arg1: memref<2xi32, #tpu.memory_space<smem>>, %arg2: memref<256x128xbf16, #tpu.memory_space<vmem>>, %arg3: memref<1x128x128xbf16, #tpu.memory_space<vmem>>, %arg4: memref<256x128xf32, #tpu.memory_space<vmem>>) attributes {dimension_semantics = [#tpu.dimension_semantics<parallel>], iteration_bounds = array<i64: 2>, scalar_prefetch = 1 : i64, scratch_operands = 0 : i64, tpu.core_type = #tpu.core_type<tc>, window_params = [{transform_indices = @transform_0, window_bounds = array<i64: 256, 128>}, {transform_indices = @transform_1, window_bounds = array<i64: 1, 128, 128>}, {transform_indices = @transform_2, window_bounds = array<i64: 256, 128>}]} {
    %c0 = arith.constant 0 : index
    %c0_0 = arith.constant 0 : index
    %0 = vector.load %arg2[%c0, %c0_0] : memref<256x128xbf16, #tpu.memory_space<vmem>>, vector<256x128xbf16>
    %c0_1 = arith.constant 0 : index
    %c0_2 = arith.constant 0 : index
    %c0_3 = arith.constant 0 : index
    %1 = vector.load %arg3[%c0_1, %c0_2, %c0_3] : memref<1x128x128xbf16, #tpu.memory_space<vmem>>, vector<1x128x128xbf16>
    %2 = vector.shape_cast %1 : vector<1x128x128xbf16> to vector<128x128xbf16>
    %cst = arith.constant dense<0.000000e+00> : vector<256x128xf32>
    %3 = tpu.matmul %0, %2, %cst {dimension_numbers = #tpu.dot_dimension_numbers<[1], [0], [0], [1], [0, 0, 1, 1], [], []>} : vector<256x128xbf16>, vector<128x128xbf16>, vector<256x128xf32> -> vector<256x128xf32>
    %cst_4 = arith.constant 0.000000e+00 : f32
    %4 = vector.broadcast %cst_4 : f32 to vector<256x128xf32>
    %5 = arith.cmpf ogt, %3, %4 : vector<256x128xf32>
    %cst_5 = arith.constant 0.00999999977 : f32
    %6 = vector.broadcast %cst_5 : f32 to vector<256x128xf32>
    %7 = arith.mulf %6, %3 : vector<256x128xf32>
    %8 = arith.select %5, %3, %7 : vector<256x128xi1>, vector<256x128xf32>
    %c0_6 = arith.constant 0 : index
    %c0_7 = arith.constant 0 : index
    %9 = vector.load %arg4[%c0_6, %c0_7] : memref<256x128xf32, #tpu.memory_space<vmem>>, vector<256x128xf32>
    tpu.vector_store %arg4[%c0_6, %c0_7], %8 {strides = array<i32>} : memref<256x128xf32, #tpu.memory_space<vmem>>, vector<256x128xf32>,
    return
  }
  func.func @transform_0(%arg0: i32, %arg1: memref<2xi32, #tpu.memory_space<smem>>) -> (i32, i32) {
    %c0_i32 = arith.constant 0 : i32
    %c0_i32_0 = arith.constant 0 : i32
    return %arg0, %c0_i32 : i32, i32
  }
  func.func @transform_1(%arg0: i32, %arg1: memref<2xi32, #tpu.memory_space<smem>>) -> (i32, i32, i32) {
    %0 = arith.index_cast %arg0 : i32 to index
    %1 = memref.load %arg1[%0] : memref<2xi32, #tpu.memory_space<smem>>
    %c0_i32 = arith.constant 0 : i32
    %c0_i32_0 = arith.constant 0 : i32
    %c0_i32_1 = arith.constant 0 : i32
    return %1, %c0_i32, %c0_i32_0 : i32, i32, i32
  }
  func.func @transform_2(%arg0: i32, %arg1: memref<2xi32, #tpu.memory_space<smem>>) -> (i32, i32) {
    %c0_i32 = arith.constant 0 : i32
    %c0_i32_0 = arith.constant 0 : i32
    return %arg0, %c0_i32 : i32, i32
  }
}

</mosaic_0001>

<llo_original>
// kernel: _lp_heter_forward.1
$region0: #{_lp_heter_forward.1}
  #allocation0 [shape = 'u32[]', space=smem, size = 0x4, offset = 0x4, fixed_abs, tag = 'smem constant byte address 0x4 - core index']
  #allocation1 [shape = 'u32[144,128]{1,0:T(1,128)}', space=vmem, size = 0x12000, scoped, tag = 'internal scratch']
  #allocation2 [shape = 's32[1]{0}', space=sflag, size = 0x4, scoped, tag = 'scoped memory for _lp_heter_forward.1']
  #allocation3 [shape = 'u8[512]{0}', space=smem, size = 0x200, scoped, tag = 'prefetched SMEM operand 0']
  %s0 = inlined_call_operand.vmem [shape: s32[2], index: 0, kind: input, shape index: {}]
  %s1 = inlined_call_operand.vmem [shape: bf16[512,128], index: 1, kind: input, shape index: {}]
  %s2 = inlined_call_operand.vmem [shape: bf16[2,128,128], index: 2, kind: input, shape index: {}]
  %s3 = inlined_call_operand.vmem [shape: f32[512,128], index: 3, kind: output, shape index: {}]
  %s4 = sld [smem:[#allocation0]]
  $region41: #{_lp_heter_forward.1} parent=0
    _
  %s6 = ssub.s32 1, %s4
  %s7 = scalar_select 0, %s6, %s4
  %s8 = sshll.u32 %s0, 4
  %s9 = int_to_ptr.vmem [resolvable:$true] %s8
  %11 = dma.vmem_to_smem %s9, 16, [#allocation3], [#allocation2]
  %12 = dma.done [#allocation2], 16
  %13 = sfence
  loop: start=0, step=1, limit=4
  $region2: #{_lp_heter_forward.1} parent=0 // loop_pre_header
    _
  $region3: #{_lp_heter_forward.1} parent=0 // loop_header
    %s15 = sphi 0, %s19
    %p16 = scmp.ge.s32.totalorder %s15, 4
    %s25 = sphi 0, %s27
    %s28 = sphi 0, %s25
    %s29 = sphi 0, %s28
    %s45 = sphi 0, %s29
    %s53 = sphi 0, %s55
    %s56 = sphi 0, %s53
    %s57 = sphi 0, %s56
    %s73 = sphi 0, %s57
    %s79 = sphi 0, %s81
    %s82 = sphi 0, %s79
    %s83 = sphi 0, %s82
    %s99 = sphi 0, %s83
  $region4: #{_lp_heter_forward.1} parent=0 // loop_header_branch
    %18 = sbr.rel (%p16) target = $region8
  $region5: #{_lp_heter_forward.1} parent=0 // loop_body
    %s20 = ssub.s32 %s15, 1
    %s21 = ssub.s32 %s15, 2
    %s22 = sadd.s32 %s15, 1
    %s23 = ssub.s32 %s15, %s22
    %p24 = scmp.eq.s32.totalorder %s23, 0
    %s26 = sadd.s32 %s25, 1
    %s27 = scalar_select %p24, %s25, %s26
    %p30 = pneg %p24
    %p31 = scmp.eq.s32.totalorder %s15, 1
    %p32 = por %p30, %p31
    %p33 = scmp.ne.s32.totalorder %s25, %s28
    %p34 = scmp.eq.s32.totalorder %s15, 0
    %p35 = por %p33, %p34
    %p36 = scmp.ne.s32.totalorder %s25, %s28
    %p37 = scmp.eq.s32.totalorder %s20, 1
    %p38 = por %p36, %p37
    %p39 = scmp.ne.s32.totalorder %s28, %s29
    %p40 = scmp.eq.s32.totalorder %s20, 0
    %p41 = por %p39, %p40
    %p42 = scmp.ne.s32.totalorder %s28, %s29
    %p43 = scmp.eq.s32.totalorder %s21, 1
    %p44 = por %p42, %p43
    %p46 = scmp.ne.s32.totalorder %s29, %s45
    %p47 = scmp.eq.s32.totalorder %s21, 0
    %p48 = por %p46, %p47
    %s49 = sld [smem:[#allocation3 + %s15]]
    %s50 = sld [smem:[#allocation3 + %s22]]
    %s51 = ssub.s32 %s49, %s50
    %p52 = scmp.eq.s32.totalorder %s51, 0
    %s54 = sadd.s32 %s53, 1
    %s55 = scalar_select %p52, %s53, %s54
    %p58 = pneg %p52
    %p59 = scmp.eq.s32.totalorder %s15, 1
    %p60 = por %p58, %p59
    %p61 = scmp.ne.s32.totalorder %s53, %s56
    %p62 = scmp.eq.s32.totalorder %s15, 0
    %p63 = por %p61, %p62
    %p64 = scmp.ne.s32.totalorder %s53, %s56
    %p65 = scmp.eq.s32.totalorder %s20, 1
    %p66 = por %p64, %p65
    %p67 = scmp.ne.s32.totalorder %s56, %s57
    %p68 = scmp.eq.s32.totalorder %s20, 0
    %p69 = por %p67, %p68
    %p70 = scmp.ne.s32.totalorder %s56, %s57
    %p71 = scmp.eq.s32.totalorder %s21, 1
    %p72 = por %p70, %p71
    %p74 = scmp.ne.s32.totalorder %s57, %s73
    %p75 = scmp.eq.s32.totalorder %s21, 0
    %p76 = por %p74, %p75
    %s77 = ssub.s32 %s15, %s22
    %p78 = scmp.eq.s32.totalorder %s77, 0
    %s80 = sadd.s32 %s79, 1
    %s81 = scalar_select %p78, %s79, %s80
    %p84 = pneg %p78
    %p85 = scmp.eq.s32.totalorder %s15, 1
    %p86 = por %p84, %p85
    %p87 = scmp.ne.s32.totalorder %s79, %s82
    %p88 = scmp.eq.s32.totalorder %s15, 0
    %p89 = por %p87, %p88
    %p90 = scmp.ne.s32.totalorder %s79, %s82
    %p91 = scmp.eq.s32.totalorder %s20, 1
    %p92 = por %p90, %p91
    %p93 = scmp.ne.s32.totalorder %s82, %s83
    %p94 = scmp.eq.s32.totalorder %s20, 0
    %p95 = por %p93, %p94
    %p96 = scmp.ne.s32.totalorder %s82, %s83
    %p97 = scmp.eq.s32.totalorder %s21, 1
    %p98 = por %p96, %p97
    %p100 = scmp.ne.s32.totalorder %s83, %s99
    %p101 = scmp.eq.s32.totalorder %s21, 0
    %p102 = por %p100, %p101
    %p103 = scmp.le.s32.totalorder 1, %s15
    %p104 = scmp.lt.s32.totalorder %s15, 3
    %p105 = pnand %p103, %p104
    %p106 = pneg %p105
    // Predicated region
    $region9: #{_lp_heter_forward.1} parent=5 // pred_check
      _
    $region10: #{_lp_heter_forward.1} parent=5 // pred_check_branch
      %108 = sbr.rel (%p105) target = $region12
    $region11: #{_lp_heter_forward.1} parent=5 // pred_region
      %s109 = ssub.s32 %s15, 1
    $region12: #{_lp_heter_forward.1} parent=5 // pred_fallthru
      _
    %p110 = scmp.lt.s32.totalorder %s15, 2
    // Predicated region
    $region13: #{_lp_heter_forward.1} parent=5 // pred_check
      %p111 = pneg %p110
    $region14: #{_lp_heter_forward.1} parent=5 // pred_check_branch
      %113 = sbr.rel (%p111) target = $region16
    $region15: #{_lp_heter_forward.1} parent=5 // pred_region
      // Predicated region
      $region17: #{_lp_heter_forward.1} parent=15 // pred_check
        %p114 = pneg %p35
      $region18: #{_lp_heter_forward.1} parent=15 // pred_check_branch
        %116 = sbr.rel (%p114) target = $region20
      $region19: #{_lp_heter_forward.1} parent=15 // pred_region
        %s117 = smul.u32 32, %s15
        %p118 = scmp.lt.s32.totalorder %s117, 63
        %s119 = scalar_select %p118, %s117, 63
        %s120 = smul.addr %s119, 4
        %s121 = scalar_lea.vmem %s1, %s120
        %s122 = smul.u32 32, %s15
      $region20: #{_lp_heter_forward.1} parent=15 // pred_fallthru
        _
      // Predicated region
      $region21: #{_lp_heter_forward.1} parent=15 // pred_check
        %p123 = pneg %p63
      $region22: #{_lp_heter_forward.1} parent=15 // pred_check_branch
        %125 = sbr.rel (%p123) target = $region24
      $region23: #{_lp_heter_forward.1} parent=15 // pred_region
        %s126 = sld [smem:[#allocation3 + %s15]]
        %p127 = scmp.lt.s32.totalorder %s126, 1
        %s128 = scalar_select %p127, %s126, 1
        %s129 = smul.addr %s128, 16
        %s130 = smul.addr %s129, 4
        %s131 = scalar_lea.vmem %s2, %s130
        %s132 = sld [smem:[#allocation3 + %s15]]
      $region24: #{_lp_heter_forward.1} parent=15 // pred_fallthru
        _
    $region16: #{_lp_heter_forward.1} parent=5 // pred_fallthru
      _
    %p133 = scmp.le.s32.totalorder 1, %s15
    %p134 = scmp.lt.s32.totalorder %s15, 3
    %p135 = pnand %p133, %p134
    %p136 = pneg %p135
    // Predicated region
    $region25: #{_lp_heter_forward.1} parent=5 // pred_check
      _
    $region26: #{_lp_heter_forward.1} parent=5 // pred_check_branch
      %138 = sbr.rel (%p135) target = $region28
    $region27: #{_lp_heter_forward.1} parent=5 // pred_region
      %s139 = ssub.s32 %s15, 1
      %s140 = smul.u32 32, %s20
      %p141 = scmp.lt.s32.totalorder %s140, 63
      %s142 = scalar_select %p141, %s140, 63
      %s143 = smul.addr %s142, 4
      %s144 = scalar_lea.vmem %s1, %s143
      %p145 = pneg %p41
      %p146 = pneg %p38
      %s147 = sld [smem:[#allocation3 + %s20]]
      %p148 = scmp.lt.s32.totalorder %s147, 1
      %s149 = scalar_select %p148, %s147, 1
      %s150 = smul.addr %s149, 16
      %s151 = smul.addr %s150, 4
      %s152 = scalar_lea.vmem %s2, %s151
      %p153 = pneg %p69
      %p154 = pneg %p66
      %p155 = pneg %p95
      %p156 = pneg %p92
      %s157 = smul.u32 32, %s20
      %p158 = scmp.lt.s32.totalorder %s157, 63
      %s159 = scalar_select %p158, %s157, 63
      %s160 = smul.addr %s159, 8
      %s161 = scalar_lea.vmem %s3, %s160
      %s162 = smul.u32 32, %s20
      %p163 = scmp.lt.s32.totalorder %s162, 63
      %s164 = scalar_select %p163, %s162, 63
      %s165 = smul.addr %s164, 4
      %s166 = scalar_lea.vmem %s1, %s165
      %s167 = smul.u32 32, %s20
      %s168 = sld [smem:[#allocation3 + %s20]]
      %p169 = scmp.lt.s32.totalorder %s168, 1
      %s170 = scalar_select %p169, %s168, 1
      %s171 = smul.addr %s170, 16
      %s172 = smul.addr %s171, 4
      %s173 = scalar_lea.vmem %s2, %s172
      %s174 = sld [smem:[#allocation3 + %s20]]
      %s175 = smul.u32 32, %s20
      %p176 = scmp.lt.s32.totalorder %s175, 63
      %s177 = scalar_select %p176, %s175, 63
      %s178 = smul.addr %s177, 8
      %s179 = scalar_lea.vmem %s3, %s178
      %s180 = smul.u32 32, %s20
      %v182 = vld [vmem:[%s166] sm:$0xf]
      %v183 = vld [vmem:[%s166 + $0x4] sm:$0xf]
      %v184 = vld [vmem:[%s166 + $0x8] sm:$0xf]
      %v185 = vld [vmem:[%s166 + $0xc] sm:$0xf]
      %v186 = vld [vmem:[%s166 + $0x10] sm:$0xf]
      %v187 = vld [vmem:[%s166 + $0x14] sm:$0xf]
      %v188 = vld [vmem:[%s166 + $0x18] sm:$0xf]
      %v189 = vld [vmem:[%s166 + $0x1c] sm:$0xf]
      %v190 = vld [vmem:[%s166 + $0x20] sm:$0xf]
      %v191 = vld [vmem:[%s166 + $0x24] sm:$0xf]
      %v192 = vld [vmem:[%s166 + $0x28] sm:$0xf]
      %v193 = vld [vmem:[%s166 + $0x2c] sm:$0xf]
      %v194 = vld [vmem:[%s166 + $0x30] sm:$0xf]
      %v195 = vld [vmem:[%s166 + $0x34] sm:$0xf]
      %v196 = vld [vmem:[%s166 + $0x38] sm:$0xf]
      %v197 = vld [vmem:[%s166 + $0x3c] sm:$0xf]
      %v198 = vld [vmem:[%s166 + $0x40] sm:$0xf]
      %v199 = vld [vmem:[%s166 + $0x44] sm:$0xf]
      %v200 = vld [vmem:[%s166 + $0x48] sm:$0xf]
      %v201 = vld [vmem:[%s166 + $0x4c] sm:$0xf]
      %v202 = vld [vmem:[%s166 + $0x50] sm:$0xf]
      %v203 = vld [vmem:[%s166 + $0x54] sm:$0xf]
      %v204 = vld [vmem:[%s166 + $0x58] sm:$0xf]
      %v205 = vld [vmem:[%s166 + $0x5c] sm:$0xf]
      %v206 = vld [vmem:[%s166 + $0x60] sm:$0xf]
      %v207 = vld [vmem:[%s166 + $0x64] sm:$0xf]
      %v208 = vld [vmem:[%s166 + $0x68] sm:$0xf]
      %v209 = vld [vmem:[%s166 + $0x6c] sm:$0xf]
      %v210 = vld [vmem:[%s166 + $0x70] sm:$0xf]
      %v211 = vld [vmem:[%s166 + $0x74] sm:$0xf]
      %v212 = vld [vmem:[%s166 + $0x78] sm:$0xf]
      %v213 = vld [vmem:[%s166 + $0x7c] sm:$0xf]
      %v214 = vld [vmem:[%s173] sm:$0xf]
      %v215 = vld [vmem:[%s173 + $0x4] sm:$0xf]
      %v216 = vld [vmem:[%s173 + $0x8] sm:$0xf]
      %v217 = vld [vmem:[%s173 + $0xc] sm:$0xf]
      %v218 = vld [vmem:[%s173 + $0x10] sm:$0xf]
      %v219 = vld [vmem:[%s173 + $0x14] sm:$0xf]
      %v220 = vld [vmem:[%s173 + $0x18] sm:$0xf]
      %v221 = vld [vmem:[%s173 + $0x1c] sm:$0xf]
      %v222 = vld [vmem:[%s173 + $0x20] sm:$0xf]
      %v223 = vld [vmem:[%s173 + $0x24] sm:$0xf]
      %v224 = vld [vmem:[%s173 + $0x28] sm:$0xf]
      %v225 = vld [vmem:[%s173 + $0x2c] sm:$0xf]
      %v226 = vld [vmem:[%s173 + $0x30] sm:$0xf]
      %v227 = vld [vmem:[%s173 + $0x34] sm:$0xf]
      %v228 = vld [vmem:[%s173 + $0x38] sm:$0xf]
      %v229 = vld [vmem:[%s173 + $0x3c] sm:$0xf]
      %v262 = vunpack.c.l.b16 %v182
      %v263 = vunpack.c.l.b16 %v183
      %v264 = vunpack.c.l.b16 %v184
      %v265 = vunpack.c.l.b16 %v185
      %v266 = vunpack.c.l.b16 %v186
      %v267 = vunpack.c.l.b16 %v187
      %v268 = vunpack.c.l.b16 %v188
      %v269 = vunpack.c.l.b16 %v189
      %v270 = vunpack.c.l.b16 %v190
      %v271 = vunpack.c.l.b16 %v191
      %v272 = vunpack.c.l.b16 %v192
      %v273 = vunpack.c.l.b16 %v193
      %v274 = vunpack.c.l.b16 %v194
      %v275 = vunpack.c.l.b16 %v195
      %v276 = vunpack.c.l.b16 %v196
      %v277 = vunpack.c.l.b16 %v197
      %v278 = vunpack.c.l.b16 %v198
      %v279 = vunpack.c.l.b16 %v199
      %v280 = vunpack.c.l.b16 %v200
      %v281 = vunpack.c.l.b16 %v201
      %v282 = vunpack.c.l.b16 %v202
      %v283 = vunpack.c.l.b16 %v203
      %v284 = vunpack.c.l.b16 %v204
      %v285 = vunpack.c.l.b16 %v205
      %v286 = vunpack.c.l.b16 %v206
      %v287 = vunpack.c.l.b16 %v207
      %v288 = vunpack.c.l.b16 %v208
      %v289 = vunpack.c.l.b16 %v209
      %v290 = vunpack.c.l.b16 %v210
      %v291 = vunpack.c.l.b16 %v211
      %v292 = vunpack.c.l.b16 %v212
      %v293 = vunpack.c.l.b16 %v213
      %v294 = vpack.c.b16 %v263, %v262
      %v295 = vpack.c.b16 %v265, %v264
      %v296 = vpack.c.b16 %v267, %v266
      %v297 = vpack.c.b16 %v269, %v268
      %v298 = vpack.c.b16 %v271, %v270
      %v299 = vpack.c.b16 %v273, %v272
      %v300 = vpack.c.b16 %v275, %v274
      %v301 = vpack.c.b16 %v277, %v276
      %v302 = vpack.c.b16 %v279, %v278
      %v303 = vpack.c.b16 %v281, %v280
      %v304 = vpack.c.b16 %v283, %v282
      %v305 = vpack.c.b16 %v285, %v284
      %v306 = vpack.c.b16 %v287, %v286
      %v307 = vpack.c.b16 %v289, %v288
      %v308 = vpack.c.b16 %v291, %v290
      %v309 = vpack.c.b16 %v293, %v292
      %v342 = vunpack.c.l.b16 %v214
      %v343 = vunpack.c.l.b16 %v215
      %v344 = vunpack.c.l.b16 %v216
      %v345 = vunpack.c.l.b16 %v217
      %v346 = vunpack.c.l.b16 %v218
      %v347 = vunpack.c.l.b16 %v219
      %v348 = vunpack.c.l.b16 %v220
      %v349 = vunpack.c.l.b16 %v221
      %v350 = vunpack.c.l.b16 %v222
      %v351 = vunpack.c.l.b16 %v223
      %v352 = vunpack.c.l.b16 %v224
      %v353 = vunpack.c.l.b16 %v225
      %v354 = vunpack.c.l.b16 %v226
      %v355 = vunpack.c.l.b16 %v227
      %v356 = vunpack.c.l.b16 %v228
      %v357 = vunpack.c.l.b16 %v229
      %v358 = vpack.c.b16 %v343, %v342
      %v359 = vpack.c.b16 %v345, %v344
      %v360 = vpack.c.b16 %v347, %v346
      %v361 = vpack.c.b16 %v349, %v348
      %v362 = vpack.c.b16 %v351, %v350
      %v363 = vpack.c.b16 %v353, %v352
      %v364 = vpack.c.b16 %v355, %v354
      %v365 = vpack.c.b16 %v357, %v356
      %374 = vmatprep.subr.bf16.mxu0 0
      %375 = vmatpush1.bf16.msra.mxu0 %v365
      %376 = vmatprep.subr.bf16.mxu0 0
      %377 = vmatpush1.bf16.msra.mxu0 %v364
      %378 = vmatprep.subr.bf16.mxu0 0
      %379 = vmatpush1.bf16.msra.mxu0 %v363
      %380 = vmatprep.subr.bf16.mxu0 0
      %381 = vmatpush1.bf16.msra.mxu0 %v362
      %382 = vmatprep.subr.bf16.mxu0 0
      %383 = vmatpush1.bf16.msra.mxu0 %v361
      %384 = vmatprep.subr.bf16.mxu0 0
      %385 = vmatpush1.bf16.msra.mxu0 %v360
      %386 = vmatprep.subr.bf16.mxu0 0
      %387 = vmatpush1.bf16.msra.mxu0 %v359
      %388 = vmatprep.subr.bf16.mxu0 0
      %389 = vmatpush1.bf16.msra.mxu0 %v358
      %390 = vmatprep.subr.bf16.mxu0 0
      %391 = vmatpush2.bf16.msra.mxu0 0
      %392 = vmatprep.subr.bf16.mxu0 0
      %393 = vmatpush2.bf16.msra.mxu0 0
      %394 = vmatprep.subr.bf16.mxu0 0
      %395 = vmatpush2.bf16.msra.mxu0 0
      %396 = vmatprep.subr.bf16.mxu0 0
      %397 = vmatpush2.bf16.msra.mxu0 0
      %398 = vmatprep.subr.bf16.mxu0 0
      %399 = vmatpush2.bf16.msra.mxu0 0
      %400 = vmatprep.subr.bf16.mxu0 0
      %401 = vmatpush2.bf16.msra.mxu0 0
      %402 = vmatprep.subr.bf16.mxu0 0
      %403 = vmatpush2.bf16.msra.mxu0 0
      %404 = vmatprep.subr.bf16.mxu0 0
      %405 = vmatpush2.bf16.msra.mxu0 0
      %406 = vmatprep.mubr.bf16.mxu0 0
      %407 = vmatmul.mubr.bf16.gmra.mxu0 %v294
      %v408 = vpop.f32.mrf.mxu0
      %v409 = vadd.f32 0.0, %v408
      %v410 = vpop.f32.mrf.mxu0
      %v411 = vpop.f32.mrf.mxu0
      %v412 = vadd.f32 0.0, %v411
      %v413 = vpop.f32.mrf.mxu0
      %414 = vmatprep.mubr.bf16.mxu0 0
      %415 = vmatmul.mubr.bf16.gmra.mxu0 %v295
      %v416 = vpop.f32.mrf.mxu0
      %v417 = vadd.f32 0.0, %v416
      %v418 = vpop.f32.mrf.mxu0
      %v419 = vpop.f32.mrf.mxu0
      %v420 = vadd.f32 0.0, %v419
      %v421 = vpop.f32.mrf.mxu0
      %422 = vmatprep.mubr.bf16.mxu0 0
      %423 = vmatmul.mubr.bf16.gmra.mxu0 %v296
      %v424 = vpop.f32.mrf.mxu0
      %v425 = vadd.f32 0.0, %v424
      %v426 = vpop.f32.mrf.mxu0
      %v427 = vpop.f32.mrf.mxu0
      %v428 = vadd.f32 0.0, %v427
      %v429 = vpop.f32.mrf.mxu0
      %430 = vmatprep.mubr.bf16.mxu0 0
      %431 = vmatmul.mubr.bf16.gmra.mxu0 %v297
      %v432 = vpop.f32.mrf.mxu0
      %v433 = vadd.f32 0.0, %v432
      %v434 = vpop.f32.mrf.mxu0
      %v435 = vpop.f32.mrf.mxu0
      %v436 = vadd.f32 0.0, %v435
      %v437 = vpop.f32.mrf.mxu0
      %438 = vmatprep.mubr.bf16.mxu0 0
      %439 = vmatmul.mubr.bf16.gmra.mxu0 %v298
      %v440 = vpop.f32.mrf.mxu0
      %v441 = vadd.f32 0.0, %v440
      %v442 = vpop.f32.mrf.mxu0
      %v443 = vpop.f32.mrf.mxu0
      %v444 = vadd.f32 0.0, %v443
      %v445 = vpop.f32.mrf.mxu0
      %446 = vmatprep.mubr.bf16.mxu0 0
      %447 = vmatmul.mubr.bf16.gmra.mxu0 %v299
      %v448 = vpop.f32.mrf.mxu0
      %v449 = vadd.f32 0.0, %v448
      %v450 = vpop.f32.mrf.mxu0
      %v451 = vpop.f32.mrf.mxu0
      %v452 = vadd.f32 0.0, %v451
      %v453 = vpop.f32.mrf.mxu0
      %454 = vmatprep.mubr.bf16.mxu0 0
      %455 = vmatmul.mubr.bf16.gmra.mxu0 %v300
      %v456 = vpop.f32.mrf.mxu0
      %v457 = vadd.f32 0.0, %v456
      %v458 = vpop.f32.mrf.mxu0
      %v459 = vpop.f32.mrf.mxu0
      %v460 = vadd.f32 0.0, %v459
      %v461 = vpop.f32.mrf.mxu0
      %462 = vmatprep.mubr.bf16.mxu0 0
      %463 = vmatmul.mubr.bf16.gmra.mxu0 %v301
      %v464 = vpop.f32.mrf.mxu0
      %v465 = vadd.f32 0.0, %v464
      %v466 = vpop.f32.mrf.mxu0
      %v467 = vpop.f32.mrf.mxu0
      %v468 = vadd.f32 0.0, %v467
      %v469 = vpop.f32.mrf.mxu0
      %470 = vmatprep.mubr.bf16.mxu0 0
      %471 = vmatmul.mubr.bf16.gmra.mxu0 %v302
      %v472 = vpop.f32.mrf.mxu0
      %v473 = vadd.f32 0.0, %v472
      %v474 = vpop.f32.mrf.mxu0
      %v475 = vpop.f32.mrf.mxu0
      %v476 = vadd.f32 0.0, %v475
      %v477 = vpop.f32.mrf.mxu0
      %478 = vmatprep.mubr.bf16.mxu0 0
      %479 = vmatmul.mubr.bf16.gmra.mxu0 %v303
      %v480 = vpop.f32.mrf.mxu0
      %v481 = vadd.f32 0.0, %v480
      %v482 = vpop.f32.mrf.mxu0
      %v483 = vpop.f32.mrf.mxu0
      %v484 = vadd.f32 0.0, %v483
      %v485 = vpop.f32.mrf.mxu0
      %486 = vmatprep.mubr.bf16.mxu0 0
      %487 = vmatmul.mubr.bf16.gmra.mxu0 %v304
      %v488 = vpop.f32.mrf.mxu0
      %v489 = vadd.f32 0.0, %v488
      %v490 = vpop.f32.mrf.mxu0
      %v491 = vpop.f32.mrf.mxu0
      %v492 = vadd.f32 0.0, %v491
      %v493 = vpop.f32.mrf.mxu0
      %494 = vmatprep.mubr.bf16.mxu0 0
      %495 = vmatmul.mubr.bf16.gmra.mxu0 %v305
      %v496 = vpop.f32.mrf.mxu0
      %v497 = vadd.f32 0.0, %v496
      %v498 = vpop.f32.mrf.mxu0
      %v499 = vpop.f32.mrf.mxu0
      %v500 = vadd.f32 0.0, %v499
      %v501 = vpop.f32.mrf.mxu0
      %502 = vmatprep.mubr.bf16.mxu0 0
      %503 = vmatmul.mubr.bf16.gmra.mxu0 %v306
      %v504 = vpop.f32.mrf.mxu0
      %v505 = vadd.f32 0.0, %v504
      %v506 = vpop.f32.mrf.mxu0
      %v507 = vpop.f32.mrf.mxu0
      %v508 = vadd.f32 0.0, %v507
      %v509 = vpop.f32.mrf.mxu0
      %510 = vmatprep.mubr.bf16.mxu0 0
      %511 = vmatmul.mubr.bf16.gmra.mxu0 %v307
      %v512 = vpop.f32.mrf.mxu0
      %v513 = vadd.f32 0.0, %v512
      %v514 = vpop.f32.mrf.mxu0
      %v515 = vpop.f32.mrf.mxu0
      %v516 = vadd.f32 0.0, %v515
      %v517 = vpop.f32.mrf.mxu0
      %518 = vmatprep.mubr.bf16.mxu0 0
      %519 = vmatmul.mubr.bf16.gmra.mxu0 %v308
      %v520 = vpop.f32.mrf.mxu0
      %v521 = vadd.f32 0.0, %v520
      %v522 = vpop.f32.mrf.mxu0
      %v523 = vpop.f32.mrf.mxu0
      %v524 = vadd.f32 0.0, %v523
      %v525 = vpop.f32.mrf.mxu0
      %526 = vmatprep.mubr.bf16.mxu0 0
      %527 = vmatmul.mubr.bf16.gmra.mxu0 %v309
      %v528 = vpop.f32.mrf.mxu0
      %v529 = vadd.f32 0.0, %v528
      %v530 = vpop.f32.mrf.mxu0
      %v531 = vpop.f32.mrf.mxu0
      %v532 = vadd.f32 0.0, %v531
      %v533 = vpop.f32.mrf.mxu0
      %534 = vdwg.mxu0
      %vm535 = vcmp.gt.f32.partialorder %v409, 0.0
      %vm536 = vcmp.gt.f32.partialorder %v412, 0.0
      %vm537 = vcmp.gt.f32.partialorder %v417, 0.0
      %vm538 = vcmp.gt.f32.partialorder %v420, 0.0
      %vm539 = vcmp.gt.f32.partialorder %v425, 0.0
      %vm540 = vcmp.gt.f32.partialorder %v428, 0.0
      %vm541 = vcmp.gt.f32.partialorder %v433, 0.0
      %vm542 = vcmp.gt.f32.partialorder %v436, 0.0
      %vm543 = vcmp.gt.f32.partialorder %v441, 0.0
      %vm544 = vcmp.gt.f32.partialorder %v444, 0.0
      %vm545 = vcmp.gt.f32.partialorder %v449, 0.0
      %vm546 = vcmp.gt.f32.partialorder %v452, 0.0
      %vm547 = vcmp.gt.f32.partialorder %v457, 0.0
      %vm548 = vcmp.gt.f32.partialorder %v460, 0.0
      %vm549 = vcmp.gt.f32.partialorder %v465, 0.0
      %vm550 = vcmp.gt.f32.partialorder %v468, 0.0
      %vm551 = vcmp.gt.f32.partialorder %v473, 0.0
      %vm552 = vcmp.gt.f32.partialorder %v476, 0.0
      %vm553 = vcmp.gt.f32.partialorder %v481, 0.0
      %vm554 = vcmp.gt.f32.partialorder %v484, 0.0
      %vm555 = vcmp.gt.f32.partialorder %v489, 0.0
      %vm556 = vcmp.gt.f32.partialorder %v492, 0.0
      %vm557 = vcmp.gt.f32.partialorder %v497, 0.0
      %vm558 = vcmp.gt.f32.partialorder %v500, 0.0
      %vm559 = vcmp.gt.f32.partialorder %v505, 0.0
      %vm560 = vcmp.gt.f32.partialorder %v508, 0.0
      %vm561 = vcmp.gt.f32.partialorder %v513, 0.0
      %vm562 = vcmp.gt.f32.partialorder %v516, 0.0
      %vm563 = vcmp.gt.f32.partialorder %v521, 0.0
      %vm564 = vcmp.gt.f32.partialorder %v524, 0.0
      %vm565 = vcmp.gt.f32.partialorder %v529, 0.0
      %vm566 = vcmp.gt.f32.partialorder %v532, 0.0
      %v567 = vmul.f32 %v409, 0.01
      %v568 = vmul.f32 %v412, 0.01
      %v569 = vmul.f32 %v417, 0.01
      %v570 = vmul.f32 %v420, 0.01
      %v571 = vmul.f32 %v425, 0.01
      %v572 = vmul.f32 %v428, 0.01
      %v573 = vmul.f32 %v433, 0.01
      %v574 = vmul.f32 %v436, 0.01
      %v575 = vmul.f32 %v441, 0.01
      %v576 = vmul.f32 %v444, 0.01
      %v577 = vmul.f32 %v449, 0.01
      %v578 = vmul.f32 %v452, 0.01
      %v579 = vmul.f32 %v457, 0.01
      %v580 = vmul.f32 %v460, 0.01
      %v581 = vmul.f32 %v465, 0.01
      %v582 = vmul.f32 %v468, 0.01
      %v583 = vmul.f32 %v473, 0.01
      %v584 = vmul.f32 %v476, 0.01
      %v585 = vmul.f32 %v481, 0.01
      %v586 = vmul.f32 %v484, 0.01
      %v587 = vmul.f32 %v489, 0.01
      %v588 = vmul.f32 %v492, 0.01
      %v589 = vmul.f32 %v497, 0.01
      %v590 = vmul.f32 %v500, 0.01
      %v591 = vmul.f32 %v505, 0.01
      %v592 = vmul.f32 %v508, 0.01
      %v593 = vmul.f32 %v513, 0.01
      %v594 = vmul.f32 %v516, 0.01
      %v595 = vmul.f32 %v521, 0.01
      %v596 = vmul.f32 %v524, 0.01
      %v597 = vmul.f32 %v529, 0.01
      %v598 = vmul.f32 %v532, 0.01
      %v599 = vsel %vm535, %v409, %v567
      %v600 = vsel %vm536, %v412, %v568
      %v601 = vsel %vm537, %v417, %v569
      %v602 = vsel %vm538, %v420, %v570
      %v603 = vsel %vm539, %v425, %v571
      %v604 = vsel %vm540, %v428, %v572
      %v605 = vsel %vm541, %v433, %v573
      %v606 = vsel %vm542, %v436, %v574
      %v607 = vsel %vm543, %v441, %v575
      %v608 = vsel %vm544, %v444, %v576
      %v609 = vsel %vm545, %v449, %v577
      %v610 = vsel %vm546, %v452, %v578
      %v611 = vsel %vm547, %v457, %v579
      %v612 = vsel %vm548, %v460, %v580
      %v613 = vsel %vm549, %v465, %v581
      %v614 = vsel %vm550, %v468, %v582
      %v615 = vsel %vm551, %v473, %v583
      %v616 = vsel %vm552, %v476, %v584
      %v617 = vsel %vm553, %v481, %v585
      %v618 = vsel %vm554, %v484, %v586
      %v619 = vsel %vm555, %v489, %v587
      %v620 = vsel %vm556, %v492, %v588
      %v621 = vsel %vm557, %v497, %v589
      %v622 = vsel %vm558, %v500, %v590
      %v623 = vsel %vm559, %v505, %v591
      %v624 = vsel %vm560, %v508, %v592
      %v625 = vsel %vm561, %v513, %v593
      %v626 = vsel %vm562, %v516, %v594
      %v627 = vsel %vm563, %v521, %v595
      %v628 = vsel %vm564, %v524, %v596
      %v629 = vsel %vm565, %v529, %v597
      %v630 = vsel %vm566, %v532, %v598
      %631 = vst [vmem:[%s179] sm:$0xff] %v599
      %632 = vst [vmem:[%s179 + $0x8] sm:$0xff] %v600
      %633 = vst [vmem:[%s179 + $0x10] sm:$0xff] %v601
      %634 = vst [vmem:[%s179 + $0x18] sm:$0xff] %v602
      %635 = vst [vmem:[%s179 + $0x20] sm:$0xff] %v603
      %636 = vst [vmem:[%s179 + $0x28] sm:$0xff] %v604
      %637 = vst [vmem:[%s179 + $0x30] sm:$0xff] %v605
      %638 = vst [vmem:[%s179 + $0x38] sm:$0xff] %v606
      %639 = vst [vmem:[%s179 + $0x40] sm:$0xff] %v607
      %640 = vst [vmem:[%s179 + $0x48] sm:$0xff] %v608
      %641 = vst [vmem:[%s179 + $0x50] sm:$0xff] %v609
      %642 = vst [vmem:[%s179 + $0x58] sm:$0xff] %v610
      %643 = vst [vmem:[%s179 + $0x60] sm:$0xff] %v611
      %644 = vst [vmem:[%s179 + $0x68] sm:$0xff] %v612
      %645 = vst [vmem:[%s179 + $0x70] sm:$0xff] %v613
      %646 = vst [vmem:[%s179 + $0x78] sm:$0xff] %v614
      %647 = vst [vmem:[%s179 + $0x80] sm:$0xff] %v615
      %648 = vst [vmem:[%s179 + $0x88] sm:$0xff] %v616
      %649 = vst [vmem:[%s179 + $0x90] sm:$0xff] %v617
      %650 = vst [vmem:[%s179 + $0x98] sm:$0xff] %v618
      %651 = vst [vmem:[%s179 + $0xa0] sm:$0xff] %v619
      %652 = vst [vmem:[%s179 + $0xa8] sm:$0xff] %v620
      %653 = vst [vmem:[%s179 + $0xb0] sm:$0xff] %v621
      %654 = vst [vmem:[%s179 + $0xb8] sm:$0xff] %v622
      %655 = vst [vmem:[%s179 + $0xc0] sm:$0xff] %v623
      %656 = vst [vmem:[%s179 + $0xc8] sm:$0xff] %v624
      %657 = vst [vmem:[%s179 + $0xd0] sm:$0xff] %v625
      %658 = vst [vmem:[%s179 + $0xd8] sm:$0xff] %v626
      %659 = vst [vmem:[%s179 + $0xe0] sm:$0xff] %v627
      %660 = vst [vmem:[%s179 + $0xe8] sm:$0xff] %v628
      %661 = vst [vmem:[%s179 + $0xf0] sm:$0xff] %v629
      %662 = vst [vmem:[%s179 + $0xf8] sm:$0xff] %v630
      %s663 = smul.u32 32, %s20
      %p664 = scmp.lt.s32.totalorder %s663, 63
      %s665 = scalar_select %p664, %s663, 63
      %s666 = smul.addr %s665, 8
      %s667 = scalar_lea.vmem %s3, %s666
      // Predicated region
      $region29: #{_lp_heter_forward.1} parent=27 // pred_check
        %p668 = pneg %p92
      $region30: #{_lp_heter_forward.1} parent=27 // pred_check_branch
        %670 = sbr.rel (%p668) target = $region32
      $region31: #{_lp_heter_forward.1} parent=27 // pred_region
        %s671 = smul.u32 32, %s20
      $region32: #{_lp_heter_forward.1} parent=27 // pred_fallthru
        _
    $region28: #{_lp_heter_forward.1} parent=5 // pred_fallthru
      _
    %p672 = scmp.le.s32.totalorder 2, %s15
    // Predicated region
    $region33: #{_lp_heter_forward.1} parent=5 // pred_check
      %p673 = pneg %p672
    $region34: #{_lp_heter_forward.1} parent=5 // pred_check_branch
      %675 = sbr.rel (%p673) target = $region36
    $region35: #{_lp_heter_forward.1} parent=5 // pred_region
      %s676 = ssub.s32 %s15, 2
      // Predicated region
      $region37: #{_lp_heter_forward.1} parent=35 // pred_check
        %p677 = pneg %p98
      $region38: #{_lp_heter_forward.1} parent=35 // pred_check_branch
        %679 = sbr.rel (%p677) target = $region40
      $region39: #{_lp_heter_forward.1} parent=35 // pred_region
        %s680 = smul.u32 32, %s21
        %p681 = scmp.lt.s32.totalorder %s680, 63
        %s682 = scalar_select %p681, %s680, 63
        %s683 = smul.addr %s682, 8
        %s684 = scalar_lea.vmem %s3, %s683
      $region40: #{_lp_heter_forward.1} parent=35 // pred_fallthru
        _
    $region36: #{_lp_heter_forward.1} parent=5 // pred_fallthru
      _
  $region6: #{_lp_heter_forward.1} parent=0 // loop_footer
    %s19 = sadd.s32 1, %s15
  $region7: #{_lp_heter_forward.1} parent=0 // loop_footer_branch
    %14 = sbr.rel target = $region3
  $region8: #{_lp_heter_forward.1} parent=0 // loop_exit
    _

</llo_original>
